<compile_context>
chip_gen: v5e
topology: v5e:2x2
jax: 0.10.0
libtpu: 0.0.40
codegen_flags: <defaults>
</compile_context>

<pallas_src>
import functools

import jax
import jax.numpy as jnp
import numpy as np
from jax.experimental import pallas as pl
from jax.experimental.pallas import tpu as pltpu

EPSILON = float(jnp.finfo(jnp.float32).eps)  # matches torch.finfo(torch.float32).eps


def _round_up(v, m):
    return (v + m - 1) // m * m


def _unsuper_net_kernel(h_ref, x_ref, w1t_ref, w2t_ref, o_ref, *, n_layers, l_1, l_2):
    h = h_ref[...]                       # (tb, comp_p) f32
    x = x_ref[...]                       # (tb, features) f32
    add_const = l_1 + EPSILON            # fold l_1 + EPS into one compile-time constant

    # n_layers is small and static -> unrolled Python loop: 2 MXU matmuls + VPU/EUP
    # multiplicative update per layer.
    for i in range(n_layers):
        w1t = w1t_ref[i]                 # (comp_p, comp_p)    == fc1.weight.T (padded)
        w2t = w2t_ref[i]                 # (features, comp_p)  == fc2.weight.T (padded)
        denom = jnp.dot(h, w1t, preferred_element_type=jnp.float32)
        if l_2 != 0.0:                   # statically skipped in the unregularized case
            denom = denom + l_2 * h
        denom = denom + add_const
        numer = jnp.dot(x, w2t, preferred_element_type=jnp.float32)
        # EUP reciprocal instead of VALU divide.
        h = numer * pl.reciprocal(denom, approx=False) * h

    # h / clamp(row_sum, min=1e-12); padded columns are zero so the sum is exact.
    row_sum = jnp.maximum(jnp.sum(h, axis=1, keepdims=True), 1e-12)
    o_ref[...] = (h * pl.reciprocal(row_sum, approx=False)).astype(o_ref.dtype)


def unsuper_net(h, x, w1t, w2t, l_1=0.0, l_2=0.0, *, batch_tile=512):
    """h: (B, comp), x: (B, features), w1t: (L, comp, comp), w2t: (L, features, comp).

    w1t[i] / w2t[i] are the transposed per-layer Linear weights (fc1.weight.T, fc2.weight.T).
    """
    n_layers, comp, comp_b = w1t.shape
    batch, features = x.shape
    assert comp_b == comp and h.shape == (batch, comp)
    assert w2t.shape == (n_layers, features, comp)

    # Lane-dense padding of the component axis; sublane-aligned batch tiling.
    comp_p = _round_up(comp, 128)
    tb = min(_round_up(batch_tile, 8), _round_up(batch, 8))
    batch_p = _round_up(batch, tb)

    f32 = jnp.float32
    h_p = jnp.zeros((batch_p, comp_p), f32).at[:batch, :comp].set(h.astype(f32))
    x_p = jnp.zeros((batch_p, features), f32).at[:batch, :].set(x.astype(f32))
    w1t_p = jnp.zeros((n_layers, comp_p, comp_p), f32).at[:, :comp, :comp].set(w1t.astype(f32))
    w2t_p = jnp.zeros((n_layers, features, comp_p), f32).at[:, :, :comp].set(w2t.astype(f32))

    # VMEM budget: weights (x2 for buffering slack) + double-buffered h/x/out tiles + elementwise
    # temporaries + headroom, capped at 56 MiB (safe on v7x's 64 MiB physical VMEM).
    weight_bytes = 2 * 4 * n_layers * (comp_p * comp_p + features * comp_p)
    tile_bytes = 2 * 4 * tb * (2 * comp_p + features)
    tmp_bytes = 8 * 4 * tb * comp_p
    vmem_limit = int(min(56 * 1024 * 1024,
                         weight_bytes + tile_bytes + tmp_bytes + (8 << 20)))

    kernel = functools.partial(
        _unsuper_net_kernel, n_layers=n_layers, l_1=float(l_1), l_2=float(l_2)
    )

    out = pl.pallas_call(
        kernel,
        out_shape=jax.ShapeDtypeStruct((batch_p, comp_p), jnp.float32),
        grid=(batch_p // tb,),
        in_specs=[
            pl.BlockSpec((tb, comp_p), lambda i: (i, 0)),
            pl.BlockSpec((tb, features), lambda i: (i, 0)),
            # Constant index_maps: the full weight stack stays resident across batch tiles.
            pl.BlockSpec((n_layers, comp_p, comp_p), lambda i: (0, 0, 0)),
            pl.BlockSpec((n_layers, features, comp_p), lambda i: (0, 0, 0)),
        ],
        out_specs=pl.BlockSpec((tb, comp_p), lambda i: (i, 0)),
        compiler_params=pltpu.CompilerParams(
            dimension_semantics=("parallel",),
            vmem_limit_bytes=vmem_limit,
        ),
    )(h_p, x_p, w1t_p, w2t_p)

    return out[:batch, :comp]


def unsuper_net_ref(h, x, w1t, w2t, l_1=0.0, l_2=0.0):
    """Pure-JAX reference mirroring the PyTorch forward."""
    h = h.astype(jnp.float32)
    x = x.astype(jnp.float32)
    for i in range(w1t.shape[0]):
        denom = h @ w1t[i] + l_2 * h + l_1 + EPSILON
        numer = x @ w2t[i]
        h = (numer / denom) * h
    row_sum = jnp.maximum(jnp.sum(h, axis=1, keepdims=True), 1e-12)
    return h / row_sum


if __name__ == "__main__":
    # Small, deterministic synthetic problem.
    n_layers = 3
    batch = 8
    comp = 16
    features = 32

    key = jax.random.PRNGKey(0)
    k_h, k_x, k_w1, k_w2 = jax.random.split(key, 4)

    # NMF works on nonnegative data/factors; use positive uniform inits.
    h0 = jax.random.uniform(k_h, (batch, comp), jnp.float32, minval=0.1, maxval=1.0)
    x = jax.random.uniform(k_x, (batch, features), jnp.float32, minval=0.0, maxval=1.0)
    # Stacked per-layer Linear weights (already transposed for right-multiply).
    w1t = jax.random.uniform(k_w1, (n_layers, comp, comp), jnp.float32,
                             minval=0.01, maxval=1.0)
    w2t = jax.random.uniform(k_w2, (n_layers, features, comp), jnp.float32,
                             minval=0.01, maxval=1.0)

    # Case 1: unregularized (l_1 = l_2 = 0 -> statically elided terms).
    out0 = jax.block_until_ready(unsuper_net(h0, x, w1t, w2t, 0.0, 0.0))
    ref0 = unsuper_net_ref(h0, x, w1t, w2t, 0.0, 0.0)
    np.testing.assert_allclose(np.asarray(out0), np.asarray(ref0), rtol=1e-5, atol=1e-5)

    # Case 2: regularized path (exercises the l_1 / l_2 terms).
    out1 = jax.block_until_ready(unsuper_net(h0, x, w1t, w2t, 0.05, 0.02))
    ref1 = unsuper_net_ref(h0, x, w1t, w2t, 0.05, 0.02)
    np.testing.assert_allclose(np.asarray(out1), np.asarray(ref1), rtol=1e-5, atol=1e-5)

    print("KERNEL_OK")
</pallas_src>

<mosaic_0001>
module attributes {stable_mosaic.version = 11 : i64} {
  func.func @_unsuper_net_kernel(%arg0: i32, %arg1: memref<8x128xf32, #tpu.memory_space<vmem>>, %arg2: memref<8x32xf32, #tpu.memory_space<vmem>>, %arg3: memref<3x128x128xf32, #tpu.memory_space<vmem>>, %arg4: memref<3x32x128xf32, #tpu.memory_space<vmem>>, %arg5: memref<8x128xf32, #tpu.memory_space<vmem>>) attributes {dimension_semantics = [#tpu.dimension_semantics<parallel>], iteration_bounds = array<i64: 1>, scalar_prefetch = 0 : i64, scratch_operands = 0 : i64, tpu.core_type = #tpu.core_type<tc>, window_params = [{transform_indices = @transform_0, window_bounds = array<i64: 8, 128>}, {transform_indices = @transform_1, window_bounds = array<i64: 8, 32>}, {pipeline_mode = #tpu.pipeline_mode<synchronous>, transform_indices = @transform_2, window_bounds = array<i64: 3, 128, 128>}, {pipeline_mode = #tpu.pipeline_mode<synchronous>, transform_indices = @transform_3, window_bounds = array<i64: 3, 32, 128>}, {transform_indices = @transform_4, window_bounds = array<i64: 8, 128>}]} {
    %c0 = arith.constant 0 : index
    %c0_0 = arith.constant 0 : index
    %0 = vector.load %arg1[%c0, %c0_0] : memref<8x128xf32, #tpu.memory_space<vmem>>, vector<8x128xf32>
    %c0_1 = arith.constant 0 : index
    %c0_2 = arith.constant 0 : index
    %1 = vector.load %arg2[%c0_1, %c0_2] : memref<8x32xf32, #tpu.memory_space<vmem>>, vector<8x32xf32>
    %c0_3 = arith.constant 0 : index
    %c0_4 = arith.constant 0 : index
    %c0_5 = arith.constant 0 : index
    %2 = vector.load %arg3[%c0_3, %c0_4, %c0_5] : memref<3x128x128xf32, #tpu.memory_space<vmem>>, vector<1x128x128xf32>
    %3 = vector.shape_cast %2 : vector<1x128x128xf32> to vector<128x128xf32>
    %c0_6 = arith.constant 0 : index
    %c0_7 = arith.constant 0 : index
    %c0_8 = arith.constant 0 : index
    %4 = vector.load %arg4[%c0_6, %c0_7, %c0_8] : memref<3x32x128xf32, #tpu.memory_space<vmem>>, vector<1x32x128xf32>
    %5 = vector.shape_cast %4 : vector<1x32x128xf32> to vector<32x128xf32>
    %cst = arith.constant dense<0.000000e+00> : vector<8x128xf32>
    %6 = tpu.matmul %0, %3, %cst {dimension_numbers = #tpu.dot_dimension_numbers<[1], [0], [0], [1], [0, 0, 1, 1], [], []>} : vector<8x128xf32>, vector<128x128xf32>, vector<8x128xf32> -> vector<8x128xf32>
    %cst_9 = arith.constant 1.1920929E-7 : f32
    %7 = vector.broadcast %cst_9 : f32 to vector<8x128xf32>
    %8 = arith.addf %6, %7 : vector<8x128xf32>
    %cst_10 = arith.constant dense<0.000000e+00> : vector<8x128xf32>
    %9 = tpu.matmul %1, %5, %cst_10 {dimension_numbers = #tpu.dot_dimension_numbers<[1], [0], [0], [1], [0, 0, 1, 1], [], []>} : vector<8x32xf32>, vector<32x128xf32>, vector<8x128xf32> -> vector<8x128xf32>
    %10 = tpu.reciprocal %8 : vector<8x128xf32> -> vector<8x128xf32>
    %11 = arith.mulf %9, %10 : vector<8x128xf32>
    %12 = arith.mulf %11, %0 : vector<8x128xf32>
    %c1 = arith.constant 1 : index
    %c0_11 = arith.constant 0 : index
    %c0_12 = arith.constant 0 : index
    %13 = vector.load %arg3[%c1, %c0_11, %c0_12] : memref<3x128x128xf32, #tpu.memory_space<vmem>>, vector<1x128x128xf32>
    %14 = vector.shape_cast %13 : vector<1x128x128xf32> to vector<128x128xf32>
    %c1_13 = arith.constant 1 : index
    %c0_14 = arith.constant 0 : index
    %c0_15 = arith.constant 0 : index
    %15 = vector.load %arg4[%c1_13, %c0_14, %c0_15] : memref<3x32x128xf32, #tpu.memory_space<vmem>>, vector<1x32x128xf32>
    %16 = vector.shape_cast %15 : vector<1x32x128xf32> to vector<32x128xf32>
    %cst_16 = arith.constant dense<0.000000e+00> : vector<8x128xf32>
    %17 = tpu.matmul %12, %14, %cst_16 {dimension_numbers = #tpu.dot_dimension_numbers<[1], [0], [0], [1], [0, 0, 1, 1], [], []>} : vector<8x128xf32>, vector<128x128xf32>, vector<8x128xf32> -> vector<8x128xf32>
    %cst_17 = arith.constant 1.1920929E-7 : f32
    %18 = vector.broadcast %cst_17 : f32 to vector<8x128xf32>
    %19 = arith.addf %17, %18 : vector<8x128xf32>
    %cst_18 = arith.constant dense<0.000000e+00> : vector<8x128xf32>
    %20 = tpu.matmul %1, %16, %cst_18 {dimension_numbers = #tpu.dot_dimension_numbers<[1], [0], [0], [1], [0, 0, 1, 1], [], []>} : vector<8x32xf32>, vector<32x128xf32>, vector<8x128xf32> -> vector<8x128xf32>
    %21 = tpu.reciprocal %19 : vector<8x128xf32> -> vector<8x128xf32>
    %22 = arith.mulf %20, %21 : vector<8x128xf32>
    %23 = arith.mulf %22, %12 : vector<8x128xf32>
    %c2 = arith.constant 2 : index
    %c0_19 = arith.constant 0 : index
    %c0_20 = arith.constant 0 : index
    %24 = vector.load %arg3[%c2, %c0_19, %c0_20] : memref<3x128x128xf32, #tpu.memory_space<vmem>>, vector<1x128x128xf32>
    %25 = vector.shape_cast %24 : vector<1x128x128xf32> to vector<128x128xf32>
    %c2_21 = arith.constant 2 : index
    %c0_22 = arith.constant 0 : index
    %c0_23 = arith.constant 0 : index
    %26 = vector.load %arg4[%c2_21, %c0_22, %c0_23] : memref<3x32x128xf32, #tpu.memory_space<vmem>>, vector<1x32x128xf32>
    %27 = vector.shape_cast %26 : vector<1x32x128xf32> to vector<32x128xf32>
    %cst_24 = arith.constant dense<0.000000e+00> : vector<8x128xf32>
    %28 = tpu.matmul %23, %25, %cst_24 {dimension_numbers = #tpu.dot_dimension_numbers<[1], [0], [0], [1], [0, 0, 1, 1], [], []>} : vector<8x128xf32>, vector<128x128xf32>, vector<8x128xf32> -> vector<8x128xf32>
    %cst_25 = arith.constant 1.1920929E-7 : f32
    %29 = vector.broadcast %cst_25 : f32 to vector<8x128xf32>
    %30 = arith.addf %28, %29 : vector<8x128xf32>
    %cst_26 = arith.constant dense<0.000000e+00> : vector<8x128xf32>
    %31 = tpu.matmul %1, %27, %cst_26 {dimension_numbers = #tpu.dot_dimension_numbers<[1], [0], [0], [1], [0, 0, 1, 1], [], []>} : vector<8x32xf32>, vector<32x128xf32>, vector<8x128xf32> -> vector<8x128xf32>
    %32 = tpu.reciprocal %30 : vector<8x128xf32> -> vector<8x128xf32>
    %33 = arith.mulf %31, %32 : vector<8x128xf32>
    %34 = arith.mulf %33, %23 : vector<8x128xf32>
    %cst_27 = arith.constant dense<0.000000e+00> : vector<8xf32>
    %35 = vector.multi_reduction <add>, %34, %cst_27 [1] : vector<8x128xf32> to vector<8xf32>
    %36 = vector.shape_cast %35 : vector<8xf32> to vector<8x1xf32>
    %cst_28 = arith.constant 9.99999996E-13 : f32
    %37 = vector.broadcast %cst_28 : f32 to vector<8x1xf32>
    %38 = arith.maximumf %36, %37 : vector<8x1xf32>
    %39 = tpu.reciprocal %38 : vector<8x1xf32> -> vector<8x1xf32>
    %40 = vector.broadcast %39 : vector<8x1xf32> to vector<8x128xf32>
    %41 = arith.mulf %34, %40 : vector<8x128xf32>
    %c0_29 = arith.constant 0 : index
    %c0_30 = arith.constant 0 : index
    %42 = vector.load %arg5[%c0_29, %c0_30] : memref<8x128xf32, #tpu.memory_space<vmem>>, vector<8x128xf32>
    tpu.vector_store %arg5[%c0_29, %c0_30], %41 {strides = array<i32>} : memref<8x128xf32, #tpu.memory_space<vmem>>, vector<8x128xf32>,
    return
  }
  func.func @transform_0(%arg0: i32) -> (i32, i32) {
    %c0_i32 = arith.constant 0 : i32
    %c0_i32_0 = arith.constant 0 : i32
    return %arg0, %c0_i32 : i32, i32
  }
  func.func @transform_1(%arg0: i32) -> (i32, i32) {
    %c0_i32 = arith.constant 0 : i32
    %c0_i32_0 = arith.constant 0 : i32
    return %arg0, %c0_i32 : i32, i32
  }
  func.func @transform_2(%arg0: i32) -> (i32, i32, i32) {
    %c0_i32 = arith.constant 0 : i32
    %c0_i32_0 = arith.constant 0 : i32
    %c0_i32_1 = arith.constant 0 : i32
    %c0_i32_2 = arith.constant 0 : i32
    return %c0_i32, %c0_i32_0, %c0_i32_1 : i32, i32, i32
  }
  func.func @transform_3(%arg0: i32) -> (i32, i32, i32) {
    %c0_i32 = arith.constant 0 : i32
    %c0_i32_0 = arith.constant 0 : i32
    %c0_i32_1 = arith.constant 0 : i32
    %c0_i32_2 = arith.constant 0 : i32
    return %c0_i32, %c0_i32_0, %c0_i32_1 : i32, i32, i32
  }
  func.func @transform_4(%arg0: i32) -> (i32, i32) {
    %c0_i32 = arith.constant 0 : i32
    %c0_i32_0 = arith.constant 0 : i32
    return %arg0, %c0_i32 : i32, i32
  }
}

</mosaic_0001>

<llo_original>
// kernel: tpu_custom_call.1
$region0: #{tpu_custom_call.1}
  #allocation0 [shape = 'u32[]', space=smem, size = 0x4, offset = 0x4, fixed_abs, tag = 'smem constant byte address 0x4 - core index']
  #allocation1 [shape = 'u32[72,128]{1,0:T(1,128)}', space=vmem, size = 0x9000, scoped, tag = 'internal scratch']
  %s0 = inlined_call_operand.hbm [shape: f32[8,128], index: 0, kind: input, shape index: {}]
  %s1 = inlined_call_operand.hbm [shape: f32[8,32], index: 1, kind: input, shape index: {}]
  %s2 = inlined_call_operand.hbm [shape: f32[3,128,128], index: 2, kind: input, shape index: {}]
  %s3 = inlined_call_operand.hbm [shape: f32[3,32,128], index: 3, kind: input, shape index: {}]
  %s4 = inlined_call_operand.hbm [shape: f32[8,128], index: 4, kind: output, shape index: {}]
  %s5 = sld [smem:[#allocation0]]
  $region42: #{tpu_custom_call.1} parent=0
    _
  %s7 = ssub.s32 1, %s5
  %s8 = scalar_select 0, %s7, %s5
  $region1: #{tpu_custom_call.1} parent=0
    #allocation2 [shape = 'u8[4096]{0}', space=vmem, size = 0x1000, scoped, tag = 'input window, operand 0, single buffered']
    #allocation3 [shape = 's32[1]{0}', space=sflag, size = 0x4, scoped, tag = 'scoped memory for tpu_custom_call.1']
    #allocation4 [shape = 's32[1]{0}', space=sflag, size = 0x4, scoped, tag = 'scoped memory for tpu_custom_call.1']
    #allocation5 [shape = 'u8[4096]{0}', space=vmem, size = 0x1000, scoped, tag = 'input window, operand 1, single buffered']
    #allocation6 [shape = 's32[1]{0}', space=sflag, size = 0x4, scoped, tag = 'scoped memory for tpu_custom_call.1']
    #allocation7 [shape = 'u8[196608]{0}', space=vmem, size = 0x30000, scoped, tag = 'input window, operand 2, single buffered']
    #allocation8 [shape = 'u8[49152]{0}', space=vmem, size = 0xc000, scoped, tag = 'input window, operand 3, single buffered']
    #allocation9 [shape = 's32[1]{0}', space=sflag, size = 0x4, scoped, tag = 'scoped memory for tpu_custom_call.1']
    #allocation10 [shape = 'u8[4096]{0}', space=vmem, size = 0x1000, scoped, tag = 'output window, operand 0, single buffered']
    %9 = vsyncpa [#allocation3], 0
    %10 = vsyncpa [#allocation6], 0
    %11 = vsyncpa [#allocation9], 0
    %12 = vsyncpa [#allocation4], 0
    // Predicated region
    $region2: #{tpu_custom_call.1} parent=1 // pred_check
      _
    $region3: #{tpu_custom_call.1} parent=1 // pred_check_branch
      %14 = sbr.rel (0) target = $region5
    $region4: #{tpu_custom_call.1} parent=1 // pred_region
      %16 = vsyncadd [#allocation3], 0
      %s18 = sshll.u32 %s0, 4
      %s19 = int_to_ptr.hbm [resolvable:$true] %s18
      %s20 = sshll.u32 [#allocation2], 4
      %s21 = int_to_ptr.vmem [resolvable:$true] %s20
      %23 = dma.hbm_to_vmem [thread:$0]  %s19, 128, %s21, [#allocation3]
    $region5: #{tpu_custom_call.1} parent=1 // pred_fallthru
      _
    // Predicated region
    $region6: #{tpu_custom_call.1} parent=1 // pred_check
      _
    $region7: #{tpu_custom_call.1} parent=1 // pred_check_branch
      %25 = sbr.rel (0) target = $region9
    $region8: #{tpu_custom_call.1} parent=1 // pred_region
      %27 = vsyncadd [#allocation6], 0
      %s29 = sshll.u32 %s1, 4
      %s30 = int_to_ptr.hbm [resolvable:$true] %s29
      %s31 = sshll.u32 [#allocation5], 4
      %s32 = int_to_ptr.vmem [resolvable:$true] %s31
      %34 = dma.hbm_to_vmem [thread:$0]  %s30, 128, %s32, [#allocation6]
    $region9: #{tpu_custom_call.1} parent=1 // pred_fallthru
      _
    // Predicated region
    $region10: #{tpu_custom_call.1} parent=1 // pred_check
      _
    $region11: #{tpu_custom_call.1} parent=1 // pred_check_branch
      %36 = sbr.rel (0) target = $region13
    $region12: #{tpu_custom_call.1} parent=1 // pred_region
      %38 = vsyncadd [#allocation6], 0
      %s39 = sshll.u32 %s2, 4
      %s40 = int_to_ptr.hbm [resolvable:$true] %s39
      %s41 = sshll.u32 [#allocation7], 4
      %s42 = int_to_ptr.vmem [resolvable:$true] %s41
      %47 = dma.hbm_to_vmem [thread:$0]  %s40, 6144, %s42, [#allocation6], 128, 128, 8
    $region13: #{tpu_custom_call.1} parent=1 // pred_fallthru
      _
    // Predicated region
    $region14: #{tpu_custom_call.1} parent=1 // pred_check
      _
    $region15: #{tpu_custom_call.1} parent=1 // pred_check_branch
      %49 = sbr.rel (0) target = $region17
    $region16: #{tpu_custom_call.1} parent=1 // pred_region
      %51 = vsyncadd [#allocation9], 0
      %s52 = sshll.u32 %s3, 4
      %s53 = int_to_ptr.hbm [resolvable:$true] %s52
      %s54 = sshll.u32 [#allocation8], 4
      %s55 = int_to_ptr.vmem [resolvable:$true] %s54
      %60 = dma.hbm_to_vmem [thread:$0]  %s53, 1536, %s55, [#allocation9], 128, 128, 8
    $region17: #{tpu_custom_call.1} parent=1 // pred_fallthru
      _
    // Predicated region
    $region18: #{tpu_custom_call.1} parent=1 // pred_check
      _
    $region19: #{tpu_custom_call.1} parent=1 // pred_check_branch
      %62 = sbr.rel (0) target = $region21
    $region20: #{tpu_custom_call.1} parent=1 // pred_region
      %64 = dma.done [#allocation3], 128
    $region21: #{tpu_custom_call.1} parent=1 // pred_fallthru
      _
    // Predicated region
    $region22: #{tpu_custom_call.1} parent=1 // pred_check
      _
    $region23: #{tpu_custom_call.1} parent=1 // pred_check_branch
      %66 = sbr.rel (0) target = $region25
    $region24: #{tpu_custom_call.1} parent=1 // pred_region
      %68 = dma.done [#allocation6], 128
    $region25: #{tpu_custom_call.1} parent=1 // pred_fallthru
      _
    // Predicated region
    $region26: #{tpu_custom_call.1} parent=1 // pred_check
      _
    $region27: #{tpu_custom_call.1} parent=1 // pred_check_branch
      %70 = sbr.rel (0) target = $region29
    $region28: #{tpu_custom_call.1} parent=1 // pred_region
      %72 = dma.done [#allocation6], 6144
    $region29: #{tpu_custom_call.1} parent=1 // pred_fallthru
      _
    // Predicated region
    $region30: #{tpu_custom_call.1} parent=1 // pred_check
      _
    $region31: #{tpu_custom_call.1} parent=1 // pred_check_branch
      %74 = sbr.rel (0) target = $region33
    $region32: #{tpu_custom_call.1} parent=1 // pred_region
      %76 = dma.done [#allocation9], 1536
    $region33: #{tpu_custom_call.1} parent=1 // pred_fallthru
      _
    %v77 = vld [vmem:[#allocation2] sm:$0xff]
    %v78 = vld [vmem:[#allocation5] sm:$0xff]
    %v79 = vld [vmem:[#allocation7] sm:$0xff]
    %v80 = vld [vmem:[#allocation7 + $0x8] sm:$0xff]
    %v81 = vld [vmem:[#allocation7 + $0x10] sm:$0xff]
    %v82 = vld [vmem:[#allocation7 + $0x18] sm:$0xff]
    %v83 = vld [vmem:[#allocation7 + $0x20] sm:$0xff]
    %v84 = vld [vmem:[#allocation7 + $0x28] sm:$0xff]
    %v85 = vld [vmem:[#allocation7 + $0x30] sm:$0xff]
    %v86 = vld [vmem:[#allocation7 + $0x38] sm:$0xff]
    %v87 = vld [vmem:[#allocation7 + $0x40] sm:$0xff]
    %v88 = vld [vmem:[#allocation7 + $0x48] sm:$0xff]
    %v89 = vld [vmem:[#allocation7 + $0x50] sm:$0xff]
    %v90 = vld [vmem:[#allocation7 + $0x58] sm:$0xff]
    %v91 = vld [vmem:[#allocation7 + $0x60] sm:$0xff]
    %v92 = vld [vmem:[#allocation7 + $0x68] sm:$0xff]
    %v93 = vld [vmem:[#allocation7 + $0x70] sm:$0xff]
    %v94 = vld [vmem:[#allocation7 + $0x78] sm:$0xff]
    %v95 = vld [vmem:[#allocation8] sm:$0xff]
    %v96 = vld [vmem:[#allocation8 + $0x8] sm:$0xff]
    %v97 = vld [vmem:[#allocation8 + $0x10] sm:$0xff]
    %v98 = vld [vmem:[#allocation8 + $0x18] sm:$0xff]
    %99 = vmatpush.msra.mxu0 %v94
    %100 = vmatpush.msra.mxu0 %v93
    %101 = vmatpush.msra.mxu0 %v92
    %102 = vmatpush.msra.mxu0 %v91
    %103 = vmatpush.msra.mxu0 %v90
    %104 = vmatpush.msra.mxu0 %v89
    %105 = vmatpush.msra.mxu0 %v88
    %106 = vmatpush.msra.mxu0 %v87
    %107 = vmatpush.msra.mxu0 %v86
    %108 = vmatpush.msra.mxu0 %v85
    %109 = vmatpush.msra.mxu0 %v84
    %110 = vmatpush.msra.mxu0 %v83
    %111 = vmatpush.msra.mxu0 %v82
    %112 = vmatpush.msra.mxu0 %v81
    %113 = vmatpush.msra.mxu0 %v80
    %114 = vmatpush.msra.mxu0 %v79
    %115 = vmatmul.f32.gmra.mxu0 %v77
    %v116 = vpop.f32.mrf.mxu0
    %v117 = vadd.f32 1.1920929e-07, %v116
    %118 = vdwg.mxu0
    %vm119 = vcmask 261120
    %v121 = vsel %vm119, %v78, 0
    %123 = vmatpush.msra.mxu0 0.0
    %124 = vmatpush.msra.mxu0 0.0
    %125 = vmatpush.msra.mxu0 0.0
    %126 = vmatpush.msra.mxu0 0.0
    %127 = vmatpush.msra.mxu0 0.0
    %128 = vmatpush.msra.mxu0 0.0
    %129 = vmatpush.msra.mxu0 0.0
    %130 = vmatpush.msra.mxu0 0.0
    %131 = vmatpush.msra.mxu0 0.0
    %132 = vmatpush.msra.mxu0 0.0
    %133 = vmatpush.msra.mxu0 0.0
    %134 = vmatpush.msra.mxu0 0.0
    %135 = vmatpush.msra.mxu0 %v98
    %136 = vmatpush.msra.mxu0 %v97
    %137 = vmatpush.msra.mxu0 %v96
    %138 = vmatpush.msra.mxu0 %v95
    %139 = vmatmul.f32.gmra.mxu0 %v121
    %v140 = vpop.f32.mrf.mxu0
    %v141 = vadd.f32 0.0, %v140
    %142 = vdwg.mxu0
    %v143 = vrcp.pop %v117
    %v144 = vmul.f32 %v117, %v143
    %v145 = vsub.f32 1.0, %v144
    %v146 = vmul.f32 %v143, %v145
    %v147 = vadd.f32 %v143, %v146
    %vm148 = vweird.f32 %v117
    %vm149 = vweird.f32 %v143
    %vm150 = vmor %vm148, %vm149
    %v151 = vsel %vm150, %v143, %v147
    %v152 = vand.u32 2147483647, %v117
    %vm153 = vcmp.eq.f32.partialorder %v152, 8.507059e+37
    %v154 = vand.u32 %v117, 2147483648
    %v155 = vor.u32 1.1754944e-38, %v154
    %v156 = vsel %vm153, %v155, %v151
    %v157 = vmul.f32 %v141, %v156
    %v158 = vmul.f32 %v157, %v77
    %s159 = scalar_lea.vmem [#allocation7], 128
    %v160 = vld [vmem:[%s159] sm:$0xff]
    %v161 = vld [vmem:[%s159 + $0x8] sm:$0xff]
    %v162 = vld [vmem:[%s159 + $0x10] sm:$0xff]
    %v163 = vld [vmem:[%s159 + $0x18] sm:$0xff]
    %v164 = vld [vmem:[%s159 + $0x20] sm:$0xff]
    %v165 = vld [vmem:[%s159 + $0x28] sm:$0xff]
    %v166 = vld [vmem:[%s159 + $0x30] sm:$0xff]
    %v167 = vld [vmem:[%s159 + $0x38] sm:$0xff]
    %v168 = vld [vmem:[%s159 + $0x40] sm:$0xff]
    %v169 = vld [vmem:[%s159 + $0x48] sm:$0xff]
    %v170 = vld [vmem:[%s159 + $0x50] sm:$0xff]
    %v171 = vld [vmem:[%s159 + $0x58] sm:$0xff]
    %v172 = vld [vmem:[%s159 + $0x60] sm:$0xff]
    %v173 = vld [vmem:[%s159 + $0x68] sm:$0xff]
    %v174 = vld [vmem:[%s159 + $0x70] sm:$0xff]
    %v175 = vld [vmem:[%s159 + $0x78] sm:$0xff]
    %s176 = scalar_lea.vmem [#allocation8], 32
    %v177 = vld [vmem:[%s176] sm:$0xff]
    %v178 = vld [vmem:[%s176 + $0x8] sm:$0xff]
    %v179 = vld [vmem:[%s176 + $0x10] sm:$0xff]
    %v180 = vld [vmem:[%s176 + $0x18] sm:$0xff]
    %181 = vmatpush.msra.mxu0 %v175
    %182 = vmatpush.msra.mxu0 %v174
    %183 = vmatpush.msra.mxu0 %v173
    %184 = vmatpush.msra.mxu0 %v172
    %185 = vmatpush.msra.mxu0 %v171
    %186 = vmatpush.msra.mxu0 %v170
    %187 = vmatpush.msra.mxu0 %v169
    %188 = vmatpush.msra.mxu0 %v168
    %189 = vmatpush.msra.mxu0 %v167
    %190 = vmatpush.msra.mxu0 %v166
    %191 = vmatpush.msra.mxu0 %v165
    %192 = vmatpush.msra.mxu0 %v164
    %193 = vmatpush.msra.mxu0 %v163
    %194 = vmatpush.msra.mxu0 %v162
    %195 = vmatpush.msra.mxu0 %v161
    %196 = vmatpush.msra.mxu0 %v160
    %197 = vmatmul.f32.gmra.mxu0 %v158
    %v198 = vpop.f32.mrf.mxu0
    %v199 = vadd.f32 1.1920929e-07, %v198
    %200 = vdwg.mxu0
    %201 = vmatpush.msra.mxu0 0.0
    %202 = vmatpush.msra.mxu0 0.0
    %203 = vmatpush.msra.mxu0 0.0
    %204 = vmatpush.msra.mxu0 0.0
    %205 = vmatpush.msra.mxu0 0.0
    %206 = vmatpush.msra.mxu0 0.0
    %207 = vmatpush.msra.mxu0 0.0
    %208 = vmatpush.msra.mxu0 0.0
    %209 = vmatpush.msra.mxu0 0.0
    %210 = vmatpush.msra.mxu0 0.0
    %211 = vmatpush.msra.mxu0 0.0
    %212 = vmatpush.msra.mxu0 0.0
    %213 = vmatpush.msra.mxu0 %v180
    %214 = vmatpush.msra.mxu0 %v179
    %215 = vmatpush.msra.mxu0 %v178
    %216 = vmatpush.msra.mxu0 %v177
    %217 = vmatmul.f32.gmra.mxu0 %v121
    %v218 = vpop.f32.mrf.mxu0
    %v219 = vadd.f32 0.0, %v218
    %220 = vdwg.mxu0
    %v221 = vrcp.pop %v199
    %v222 = vmul.f32 %v199, %v221
    %v223 = vsub.f32 1.0, %v222
    %v224 = vmul.f32 %v221, %v223
    %v225 = vadd.f32 %v221, %v224
    %vm226 = vweird.f32 %v199
    %vm227 = vweird.f32 %v221
    %vm228 = vmor %vm226, %vm227
    %v229 = vsel %vm228, %v221, %v225
    %v230 = vand.u32 2147483647, %v199
    %vm231 = vcmp.eq.f32.partialorder %v230, 8.507059e+37
    %v232 = vand.u32 %v199, 2147483648
    %v233 = vor.u32 1.1754944e-38, %v232
    %v234 = vsel %vm231, %v233, %v229
    %v235 = vmul.f32 %v219, %v234
    %v236 = vmul.f32 %v235, %v158
    %s237 = scalar_lea.vmem [#allocation7], 256
    %v238 = vld [vmem:[%s237] sm:$0xff]
    %v239 = vld [vmem:[%s237 + $0x8] sm:$0xff]
    %v240 = vld [vmem:[%s237 + $0x10] sm:$0xff]
    %v241 = vld [vmem:[%s237 + $0x18] sm:$0xff]
    %v242 = vld [vmem:[%s237 + $0x20] sm:$0xff]
    %v243 = vld [vmem:[%s237 + $0x28] sm:$0xff]
    %v244 = vld [vmem:[%s237 + $0x30] sm:$0xff]
    %v245 = vld [vmem:[%s237 + $0x38] sm:$0xff]
    %v246 = vld [vmem:[%s237 + $0x40] sm:$0xff]
    %v247 = vld [vmem:[%s237 + $0x48] sm:$0xff]
    %v248 = vld [vmem:[%s237 + $0x50] sm:$0xff]
    %v249 = vld [vmem:[%s237 + $0x58] sm:$0xff]
    %v250 = vld [vmem:[%s237 + $0x60] sm:$0xff]
    %v251 = vld [vmem:[%s237 + $0x68] sm:$0xff]
    %v252 = vld [vmem:[%s237 + $0x70] sm:$0xff]
    %v253 = vld [vmem:[%s237 + $0x78] sm:$0xff]
    %s254 = scalar_lea.vmem [#allocation8], 64
    %v255 = vld [vmem:[%s254] sm:$0xff]
    %v256 = vld [vmem:[%s254 + $0x8] sm:$0xff]
    %v257 = vld [vmem:[%s254 + $0x10] sm:$0xff]
    %v258 = vld [vmem:[%s254 + $0x18] sm:$0xff]
    %259 = vmatpush.msra.mxu0 %v253
    %260 = vmatpush.msra.mxu0 %v252
    %261 = vmatpush.msra.mxu0 %v251
    %262 = vmatpush.msra.mxu0 %v250
    %263 = vmatpush.msra.mxu0 %v249
    %264 = vmatpush.msra.mxu0 %v248
    %265 = vmatpush.msra.mxu0 %v247
    %266 = vmatpush.msra.mxu0 %v246
    %267 = vmatpush.msra.mxu0 %v245
    %268 = vmatpush.msra.mxu0 %v244
    %269 = vmatpush.msra.mxu0 %v243
    %270 = vmatpush.msra.mxu0 %v242
    %271 = vmatpush.msra.mxu0 %v241
    %272 = vmatpush.msra.mxu0 %v240
    %273 = vmatpush.msra.mxu0 %v239
    %274 = vmatpush.msra.mxu0 %v238
    %275 = vmatmul.f32.gmra.mxu0 %v236
    %v276 = vpop.f32.mrf.mxu0
    %v277 = vadd.f32 1.1920929e-07, %v276
    %278 = vdwg.mxu0
    %279 = vmatpush.msra.mxu0 0.0
    %280 = vmatpush.msra.mxu0 0.0
    %281 = vmatpush.msra.mxu0 0.0
    %282 = vmatpush.msra.mxu0 0.0
    %283 = vmatpush.msra.mxu0 0.0
    %284 = vmatpush.msra.mxu0 0.0
    %285 = vmatpush.msra.mxu0 0.0
    %286 = vmatpush.msra.mxu0 0.0
    %287 = vmatpush.msra.mxu0 0.0
    %288 = vmatpush.msra.mxu0 0.0
    %289 = vmatpush.msra.mxu0 0.0
    %290 = vmatpush.msra.mxu0 0.0
    %291 = vmatpush.msra.mxu0 %v258
    %292 = vmatpush.msra.mxu0 %v257
    %293 = vmatpush.msra.mxu0 %v256
    %294 = vmatpush.msra.mxu0 %v255
    %295 = vmatmul.f32.gmra.mxu0 %v121
    %v296 = vpop.f32.mrf.mxu0
    %v297 = vadd.f32 0.0, %v296
    %298 = vdwg.mxu0
    %v299 = vrcp.pop %v277
    %v300 = vmul.f32 %v277, %v299
    %v301 = vsub.f32 1.0, %v300
    %v302 = vmul.f32 %v299, %v301
    %v303 = vadd.f32 %v299, %v302
    %vm304 = vweird.f32 %v277
    %vm305 = vweird.f32 %v299
    %vm306 = vmor %vm304, %vm305
    %v307 = vsel %vm306, %v299, %v303
    %v308 = vand.u32 2147483647, %v277
    %vm309 = vcmp.eq.f32.partialorder %v308, 8.507059e+37
    %v310 = vand.u32 %v277, 2147483648
    %v311 = vor.u32 1.1754944e-38, %v310
    %v312 = vsel %vm309, %v311, %v307
    %v313 = vmul.f32 %v297, %v312
    %v314 = vmul.f32 %v313, %v236
    %315 = vadd.xlane.f32.xlu0 %v314
    %v316 = vpop.xlane.xlu0 %315
    %v317 = vmax.f32 %v316, 1e-12
    %v318 = vrcp.pop %v317
    %v319 = vmul.f32 %v317, %v318
    %v320 = vsub.f32 1.0, %v319
    %v321 = vmul.f32 %v318, %v320
    %v322 = vadd.f32 %v318, %v321
    %vm323 = vweird.f32 %v317
    %vm324 = vweird.f32 %v318
    %vm325 = vmor %vm323, %vm324
    %v326 = vsel %vm325, %v318, %v322
    %v327 = vand.u32 2147483647, %v317
    %vm328 = vcmp.eq.f32.partialorder %v327, 8.507059e+37
    %v329 = vand.u32 %v317, 2147483648
    %v330 = vor.u32 1.1754944e-38, %v329
    %v331 = vsel %vm328, %v330, %v326
    %v332 = vmul.f32 %v314, %v331
    %333 = vst [vmem:[#allocation10] sm:$0xff] %v332
    // Predicated region
    $region34: #{tpu_custom_call.1} parent=1 // pred_check
      _
    $region35: #{tpu_custom_call.1} parent=1 // pred_check_branch
      %335 = sbr.rel (0) target = $region37
    $region36: #{tpu_custom_call.1} parent=1 // pred_region
      %337 = vsyncadd [#allocation4], 0
      %s339 = sshll.u32 [#allocation10], 4
      %s340 = int_to_ptr.vmem [resolvable:$true] %s339
      %s341 = sshll.u32 %s4, 4
      %s342 = int_to_ptr.hbm [resolvable:$true] %s341
      %344 = dma.vmem_to_hbm [thread:$0]  %s340, 128, %s342, [#allocation4]
    $region37: #{tpu_custom_call.1} parent=1 // pred_fallthru
      _
    // Predicated region
    $region38: #{tpu_custom_call.1} parent=1 // pred_check
      _
    $region39: #{tpu_custom_call.1} parent=1 // pred_check_branch
      %346 = sbr.rel (0) target = $region41
    $region40: #{tpu_custom_call.1} parent=1 // pred_region
      %348 = dma.done [#allocation4], 128
    $region41: #{tpu_custom_call.1} parent=1 // pred_fallthru
      _
    %349 = vsyncpa [#allocation3], 1
    %350 = vsyncpa [#allocation6], 1
    %351 = vsyncpa [#allocation9], 1
    %352 = vsyncpa [#allocation4], 1

</llo_original>
